<compile_context>
chip_gen: v7x
topology: tpu7x:2x2x1
jax: 0.10.0
libtpu: 0.0.40
codegen_flags: <defaults>
</compile_context>

<pallas_src>
import jax
import jax.numpy as jnp
from jax import lax
from jax.experimental import pallas as pl
from jax.experimental.pallas import tpu as pltpu


_LANE = 128
_SUBLANE = 8
_ROW_ALIGN = 16   # multiple of 16 so bf16 inputs also satisfy the packed (16,128) tile


def _round_up(x, m):
    return ((x + m - 1) // m) * m


def _cdiv(a, b):
    return -(-a // b)


def _tile_budget():
    """Generation-aware tile cap (bigger tiles on 128-MiB-VMEM v5e/v6e,
    conservative on 64-MiB v7x).  Falls back to the safe config if the
    hardware query is unavailable."""
    max_rows, vmem_limit = 2048, 32 * 1024 * 1024
    try:
        cap = getattr(pltpu.get_tpu_info(), "vmem_capacity_bytes", 0)
        if cap >= 128 * 1024 * 1024:
            max_rows, vmem_limit = 4096, 48 * 1024 * 1024
    except Exception:
        pass
    return max_rows, vmem_limit


def _make_kernel(w1, w2, w3, tile_rows, rows, needs_mask):
    """Fused weighted-L1 accumulate; loss weights baked in as f32 constants."""

    def kernel(kf_ref, imf_ref, kfu_ref, imfu_ref, rec_ref, fk_ref, fimg_ref,
               out_ref):
        i = pl.program_id(0)

        # Output block index is constant along the reduction grid axis, so the
        # tiny (8,128) block stays resident in VMEM and is the accumulator.
        @pl.when(i == 0)
        def _():
            out_ref[...] = jnp.zeros_like(out_ref)

        fk = fk_ref[...].astype(jnp.float32)
        fi = fimg_ref[...].astype(jnp.float32)
        kf = kf_ref[...].astype(jnp.float32)
        imf = imf_ref[...].astype(jnp.float32)
        kfu = kfu_ref[...].astype(jnp.float32)
        imfu = imfu_ref[...].astype(jnp.float32)
        rec = rec_ref[...].astype(jnp.float32)

        # Pure VPU work; free filler under the HBM-read roofline.
        tile = (w1 * (jnp.abs(kf - fk) + jnp.abs(imf - fi))
                + w2 * (jnp.abs(kfu - fk) + jnp.abs(imfu - fi))
                + w3 * jnp.abs(rec - fi))

        if needs_mask:
            # Zero the undefined out-of-bounds rows of the (single) partial
            # last block.  Static compile-time bound `rows`; select, so NaN
            # garbage in the discarded branch does not propagate.
            row_id = lax.broadcasted_iota(jnp.int32, (tile_rows, _LANE), 0)
            valid = (row_id + i * tile_rows) < rows
            tile = jnp.where(valid, tile, 0.0)

        # Fold each group of 8 rows onto the resident (8,128) accumulator
        # (tile-aligned value reshape + VPU adds; no per-tile XLU reduction).
        out_ref[...] += tile.reshape(tile_rows // _SUBLANE, _SUBLANE,
                                     _LANE).sum(axis=0)

    return kernel


def mri_reconstruction_loss(k_feature, img_feature, k_fusion, img_fusion,
                            img_recon, f_k, f_img, *, l1, l2, l3):
    """Weighted dual-domain MRI reconstruction loss (scalar, float32)."""
    tensors = (k_feature, img_feature, k_fusion, img_fusion, img_recon,
               f_k, f_img)
    shape = k_feature.shape
    for t in tensors:
        assert t.shape == shape, "fused kernel assumes identical tensor shapes"
    # TODO(synk): if k-space tensors are complex64 or differ in shape from the
    #             image-domain tensors, each sub-loss needs its own layout and
    #             divisor instead of the single fused 1/n normalization.

    n = int(k_feature.size)
    w1, w2, w3 = float(l1), float(l2), float(l3)

    lane_rem = n % _LANE
    n_main = n - lane_rem
    rows = n_main // _LANE

    total = jnp.float32(0.0)

    if lane_rem:
        # <128-element lane tail handled in plain JAX (negligible traffic).
        def tail(x):
            return x.reshape(-1)[n_main:].astype(jnp.float32)

        tfk, tfi = tail(f_k), tail(f_img)
        total = total + (
            w1 * (jnp.sum(jnp.abs(tail(k_feature) - tfk))
                  + jnp.sum(jnp.abs(tail(img_feature) - tfi)))
            + w2 * (jnp.sum(jnp.abs(tail(k_fusion) - tfk))
                    + jnp.sum(jnp.abs(tail(img_fusion) - tfi)))
            + w3 * jnp.sum(jnp.abs(tail(img_recon) - tfi)))

    if rows > 0:
        max_rows, vmem_limit = _tile_budget()
        tile_rows = min(max_rows, _round_up(rows, _ROW_ALIGN))
        steps = _cdiv(rows, tile_rows)
        needs_mask = (rows % tile_rows) != 0

        def main_view(x):
            flat = x.reshape(-1)
            if lane_rem:
                flat = flat[:n_main]  # only for unaligned n; aligned path is zero-copy
            return flat.reshape(rows, _LANE)

        inputs = [main_view(t) for t in tensors]
        read_bytes = sum(jnp.dtype(t.dtype).itemsize for t in tensors) * n_main

        kernel = _make_kernel(w1, w2, w3, tile_rows, rows, needs_mask)
        in_spec = pl.BlockSpec((tile_rows, _LANE), lambda i: (i, 0))
        out_spec = pl.BlockSpec((_SUBLANE, _LANE), lambda i: (0, 0))

        partial = pl.pallas_call(
            kernel,
            out_shape=jax.ShapeDtypeStruct((_SUBLANE, _LANE), jnp.float32),
            grid=(steps,),
            in_specs=[in_spec] * 7,
            out_specs=out_spec,
            compiler_params=pltpu.CompilerParams(
                dimension_semantics=("arbitrary",),
                vmem_limit_bytes=vmem_limit),
            cost_estimate=pl.CostEstimate(
                flops=18 * n_main,
                transcendentals=0,
                bytes_accessed=read_bytes + _SUBLANE * _LANE * 4),
        )(*inputs)

        total = total + jnp.sum(partial)

    return total * jnp.float32(1.0 / float(n))


def _reference_loss(k_feature, img_feature, k_fusion, img_fusion, img_recon,
                    f_k, f_img, *, l1, l2, l3):
    """Plain-JAX reference with identical semantics (sanity check)."""
    loss1 = (jnp.mean(jnp.abs(k_feature - f_k)) +
             jnp.mean(jnp.abs(img_feature - f_img)))
    loss2 = (jnp.mean(jnp.abs(k_fusion - f_k)) +
             jnp.mean(jnp.abs(img_fusion - f_img)))
    loss3 = jnp.mean(jnp.abs(img_recon - f_img))
    return l1 * loss1 + l2 * loss2 + l3 * loss3


if __name__ == "__main__":
    # Deterministic loss weights (the module's __init__ constructor args).
    L1, L2, L3 = 1.0, 0.5, 0.1

    # Small NCHW shapes consistent with the module (lane-aligned path).
    B, C, H, W = 2, 4, 16, 16
    keys = jax.random.split(jax.random.PRNGKey(0), 7)
    tensors = [jax.random.normal(k, (B, C, H, W), jnp.float32) for k in keys]

    out = jax.block_until_ready(
        mri_reconstruction_loss(*tensors, l1=L1, l2=L2, l3=L3))
    ref = _reference_loss(*tensors, l1=L1, l2=L2, l3=L3)
    assert jnp.allclose(out, ref, rtol=1e-5, atol=1e-5), (out, ref)

    # Unaligned shape: exercises the in-kernel row mask + plain-JAX lane tail.
    keys2 = jax.random.split(jax.random.PRNGKey(1), 7)
    tensors2 = [jax.random.normal(k, (2, 3, 15, 17), jnp.float32)
                for k in keys2]
    out2 = jax.block_until_ready(
        mri_reconstruction_loss(*tensors2, l1=L1, l2=L2, l3=L3))
    ref2 = _reference_loss(*tensors2, l1=L1, l2=L2, l3=L3)
    assert jnp.allclose(out2, ref2, rtol=1e-5, atol=1e-5), (out2, ref2)

    print("KERNEL_OK")
</pallas_src>

<mosaic_0001>
module attributes {stable_mosaic.version = 11 : i64} {
  func.func @kernel(%arg0: i32, %arg1: memref<16x128xf32, #tpu.memory_space<vmem>>, %arg2: memref<16x128xf32, #tpu.memory_space<vmem>>, %arg3: memref<16x128xf32, #tpu.memory_space<vmem>>, %arg4: memref<16x128xf32, #tpu.memory_space<vmem>>, %arg5: memref<16x128xf32, #tpu.memory_space<vmem>>, %arg6: memref<16x128xf32, #tpu.memory_space<vmem>>, %arg7: memref<16x128xf32, #tpu.memory_space<vmem>>, %arg8: memref<8x128xf32, #tpu.memory_space<vmem>>) attributes {dimension_semantics = [#tpu.dimension_semantics<arbitrary>], iteration_bounds = array<i64: 1>, scalar_prefetch = 0 : i64, scratch_operands = 0 : i64, tpu.core_type = #tpu.core_type<tc>, window_params = [{transform_indices = @transform_0, window_bounds = array<i64: 16, 128>}, {transform_indices = @transform_1, window_bounds = array<i64: 16, 128>}, {transform_indices = @transform_2, window_bounds = array<i64: 16, 128>}, {transform_indices = @transform_3, window_bounds = array<i64: 16, 128>}, {transform_indices = @transform_4, window_bounds = array<i64: 16, 128>}, {transform_indices = @transform_5, window_bounds = array<i64: 16, 128>}, {transform_indices = @transform_6, window_bounds = array<i64: 16, 128>}, {pipeline_mode = #tpu.pipeline_mode<synchronous>, transform_indices = @transform_7, window_bounds = array<i64: 8, 128>}]} {
    %c0_i32 = arith.constant 0 : i32
    %0 = arith.cmpi eq, %arg0, %c0_i32 : i32
    %1 = arith.extui %0 : i1 to i32
    %c0_i32_0 = arith.constant 0 : i32
    %2 = arith.cmpi ne, %1, %c0_i32_0 : i32
    scf.if %2 {
      %cst_21 = arith.constant 0.000000e+00 : f32
      %35 = vector.broadcast %cst_21 : f32 to vector<8x128xf32>
      %c0_22 = arith.constant 0 : index
      %c0_23 = arith.constant 0 : index
      %36 = vector.load %arg8[%c0_22, %c0_23] : memref<8x128xf32, #tpu.memory_space<vmem>>, vector<8x128xf32>
      tpu.vector_store %arg8[%c0_22, %c0_23], %35 {strides = array<i32>} : memref<8x128xf32, #tpu.memory_space<vmem>>, vector<8x128xf32>,
    } else {
    }
    %c0 = arith.constant 0 : index
    %c0_1 = arith.constant 0 : index
    %3 = vector.load %arg6[%c0, %c0_1] : memref<16x128xf32, #tpu.memory_space<vmem>>, vector<16x128xf32>
    %c0_2 = arith.constant 0 : index
    %c0_3 = arith.constant 0 : index
    %4 = vector.load %arg7[%c0_2, %c0_3] : memref<16x128xf32, #tpu.memory_space<vmem>>, vector<16x128xf32>
    %c0_4 = arith.constant 0 : index
    %c0_5 = arith.constant 0 : index
    %5 = vector.load %arg1[%c0_4, %c0_5] : memref<16x128xf32, #tpu.memory_space<vmem>>, vector<16x128xf32>
    %c0_6 = arith.constant 0 : index
    %c0_7 = arith.constant 0 : index
    %6 = vector.load %arg2[%c0_6, %c0_7] : memref<16x128xf32, #tpu.memory_space<vmem>>, vector<16x128xf32>
    %c0_8 = arith.constant 0 : index
    %c0_9 = arith.constant 0 : index
    %7 = vector.load %arg3[%c0_8, %c0_9] : memref<16x128xf32, #tpu.memory_space<vmem>>, vector<16x128xf32>
    %c0_10 = arith.constant 0 : index
    %c0_11 = arith.constant 0 : index
    %8 = vector.load %arg4[%c0_10, %c0_11] : memref<16x128xf32, #tpu.memory_space<vmem>>, vector<16x128xf32>
    %c0_12 = arith.constant 0 : index
    %c0_13 = arith.constant 0 : index
    %9 = vector.load %arg5[%c0_12, %c0_13] : memref<16x128xf32, #tpu.memory_space<vmem>>, vector<16x128xf32>
    %10 = arith.subf %5, %3 : vector<16x128xf32>
    %11 = math.absf %10 : vector<16x128xf32>
    %12 = arith.subf %6, %4 : vector<16x128xf32>
    %13 = math.absf %12 : vector<16x128xf32>
    %14 = arith.addf %11, %13 : vector<16x128xf32>
    %cst = arith.constant 1.000000e+00 : f32
    %15 = vector.broadcast %cst : f32 to vector<16x128xf32>
    %16 = arith.mulf %15, %14 : vector<16x128xf32>
    %17 = arith.subf %7, %3 : vector<16x128xf32>
    %18 = math.absf %17 : vector<16x128xf32>
    %19 = arith.subf %8, %4 : vector<16x128xf32>
    %20 = math.absf %19 : vector<16x128xf32>
    %21 = arith.addf %18, %20 : vector<16x128xf32>
    %cst_14 = arith.constant 5.000000e-01 : f32
    %22 = vector.broadcast %cst_14 : f32 to vector<16x128xf32>
    %23 = arith.mulf %22, %21 : vector<16x128xf32>
    %24 = arith.addf %16, %23 : vector<16x128xf32>
    %25 = arith.subf %9, %4 : vector<16x128xf32>
    %26 = math.absf %25 : vector<16x128xf32>
    %cst_15 = arith.constant 1.000000e-01 : f32
    %27 = vector.broadcast %cst_15 : f32 to vector<16x128xf32>
    %28 = arith.mulf %27, %26 : vector<16x128xf32>
    %29 = arith.addf %24, %28 : vector<16x128xf32>
    %c0_16 = arith.constant 0 : index
    %c0_17 = arith.constant 0 : index
    %30 = vector.load %arg8[%c0_16, %c0_17] : memref<8x128xf32, #tpu.memory_space<vmem>>, vector<8x128xf32>
    %31 = vector.shape_cast %29 : vector<16x128xf32> to vector<2x8x128xf32>
    %cst_18 = arith.constant dense<0.000000e+00> : vector<8x128xf32>
    %32 = vector.multi_reduction <add>, %31, %cst_18 [0] : vector<2x8x128xf32> to vector<8x128xf32>
    %33 = arith.addf %30, %32 : vector<8x128xf32>
    %c0_19 = arith.constant 0 : index
    %c0_20 = arith.constant 0 : index
    %34 = vector.load %arg8[%c0_19, %c0_20] : memref<8x128xf32, #tpu.memory_space<vmem>>, vector<8x128xf32>
    tpu.vector_store %arg8[%c0_19, %c0_20], %33 {strides = array<i32>} : memref<8x128xf32, #tpu.memory_space<vmem>>, vector<8x128xf32>,
    return
  }
  func.func @transform_0(%arg0: i32) -> (i32, i32) {
    %c0_i32 = arith.constant 0 : i32
    %c0_i32_0 = arith.constant 0 : i32
    return %arg0, %c0_i32 : i32, i32
  }
  func.func @transform_1(%arg0: i32) -> (i32, i32) {
    %c0_i32 = arith.constant 0 : i32
    %c0_i32_0 = arith.constant 0 : i32
    return %arg0, %c0_i32 : i32, i32
  }
  func.func @transform_2(%arg0: i32) -> (i32, i32) {
    %c0_i32 = arith.constant 0 : i32
    %c0_i32_0 = arith.constant 0 : i32
    return %arg0, %c0_i32 : i32, i32
  }
  func.func @transform_3(%arg0: i32) -> (i32, i32) {
    %c0_i32 = arith.constant 0 : i32
    %c0_i32_0 = arith.constant 0 : i32
    return %arg0, %c0_i32 : i32, i32
  }
  func.func @transform_4(%arg0: i32) -> (i32, i32) {
    %c0_i32 = arith.constant 0 : i32
    %c0_i32_0 = arith.constant 0 : i32
    return %arg0, %c0_i32 : i32, i32
  }
  func.func @transform_5(%arg0: i32) -> (i32, i32) {
    %c0_i32 = arith.constant 0 : i32
    %c0_i32_0 = arith.constant 0 : i32
    return %arg0, %c0_i32 : i32, i32
  }
  func.func @transform_6(%arg0: i32) -> (i32, i32) {
    %c0_i32 = arith.constant 0 : i32
    %c0_i32_0 = arith.constant 0 : i32
    return %arg0, %c0_i32 : i32, i32
  }
  func.func @transform_7(%arg0: i32) -> (i32, i32) {
    %c0_i32 = arith.constant 0 : i32
    %c0_i32_0 = arith.constant 0 : i32
    %c0_i32_1 = arith.constant 0 : i32
    return %c0_i32, %c0_i32_0 : i32, i32
  }
}

</mosaic_0001>

<llo_original>
// kernel: tpu_custom_call.1
$region0: #{tpu_custom_call.1}
  #allocation0 [shape = 'u32[]', space=smem, size = 0x4, offset = 0x4, fixed_abs, tag = 'smem constant byte address 0x4 - core index']
  #allocation1 [shape = 'u32[144,128]{1,0:T(1,128)}', space=vmem, size = 0x12000, scoped, tag = 'internal scratch']
  %s0 = inlined_call_operand.hbm [shape: f32[16,128], index: 0, kind: input, shape index: {}]
  %s1 = inlined_call_operand.hbm [shape: f32[16,128], index: 1, kind: input, shape index: {}]
  %s2 = inlined_call_operand.hbm [shape: f32[16,128], index: 2, kind: input, shape index: {}]
  %s3 = inlined_call_operand.hbm [shape: f32[16,128], index: 3, kind: input, shape index: {}]
  %s4 = inlined_call_operand.hbm [shape: f32[16,128], index: 4, kind: input, shape index: {}]
  %s5 = inlined_call_operand.vmem [shape: f32[16,128], index: 5, kind: input, shape index: {}]
  %s6 = inlined_call_operand.hbm [shape: f32[16,128], index: 6, kind: input, shape index: {}]
  %s7 = inlined_call_operand.hbm [shape: f32[8,128], index: 7, kind: output, shape index: {}]
  %s8 = sld [smem:[#allocation0]]
  $region66: #{tpu_custom_call.1} parent=0
    _
  %s10 = ssub.s32 1, %s8
  %s11 = scalar_select 0, %s10, %s8
  $region1: #{tpu_custom_call.1} parent=0
    #allocation2 [shape = 'u8[8192]{0}', space=vmem, size = 0x2000, scoped, tag = 'input window, operand 0, single buffered']
    #allocation3 [shape = 's32[1]{0}', space=sflag, size = 0x4, scoped, tag = 'scoped memory for tpu_custom_call.1']
    #allocation4 [shape = 's32[1]{0}', space=sflag, size = 0x4, scoped, tag = 'scoped memory for tpu_custom_call.1']
    #allocation5 [shape = 'u8[8192]{0}', space=vmem, size = 0x2000, scoped, tag = 'input window, operand 1, single buffered']
    #allocation6 [shape = 's32[1]{0}', space=sflag, size = 0x4, scoped, tag = 'scoped memory for tpu_custom_call.1']
    #allocation7 [shape = 'u8[8192]{0}', space=vmem, size = 0x2000, scoped, tag = 'input window, operand 2, single buffered']
    #allocation8 [shape = 'u8[8192]{0}', space=vmem, size = 0x2000, scoped, tag = 'input window, operand 3, single buffered']
    #allocation9 [shape = 's32[1]{0}', space=sflag, size = 0x4, scoped, tag = 'scoped memory for tpu_custom_call.1']
    #allocation10 [shape = 'u8[8192]{0}', space=vmem, size = 0x2000, scoped, tag = 'input window, operand 4, single buffered']
    #allocation11 [shape = 'u8[8192]{0}', space=vmem, size = 0x2000, scoped, tag = 'input window, operand 6, single buffered']
    #allocation12 [shape = 's32[1]{0}', space=sflag, size = 0x4, scoped, tag = 'scoped memory for tpu_custom_call.1']
    #allocation13 [shape = 'u8[4096]{0}', space=vmem, size = 0x1000, scoped, tag = 'output window, operand 0, single buffered']
    %12 = vsyncpa [#allocation3], 0
    %13 = vsyncpa [#allocation6], 0
    %14 = vsyncpa [#allocation9], 0
    %15 = vsyncpa [#allocation12], 0
    %16 = vsyncpa [#allocation4], 0
    // Predicated region
    $region2: #{tpu_custom_call.1} parent=1 // pred_check
      _
    $region3: #{tpu_custom_call.1} parent=1 // pred_check_branch
      %18 = sbr.rel (0) target = $region5
    $region4: #{tpu_custom_call.1} parent=1 // pred_region
      %s20 = ssub.s32 256, 256
      %21 = vsyncadd [#allocation3], %s20
      %s22 = sshll.u32 [#allocation2], 4
      %s23 = int_to_ptr.vmem [resolvable:$true] %s22
      %28 = dma.hbm_to_vmem [thread:$0]  %s0, 256, %s23, [#allocation3], 128, 128, 8
    $region5: #{tpu_custom_call.1} parent=1 // pred_fallthru
      _
    // Predicated region
    $region6: #{tpu_custom_call.1} parent=1 // pred_check
      _
    $region7: #{tpu_custom_call.1} parent=1 // pred_check_branch
      %30 = sbr.rel (0) target = $region9
    $region8: #{tpu_custom_call.1} parent=1 // pred_region
      %s32 = ssub.s32 256, 256
      %33 = vsyncadd [#allocation6], %s32
      %s34 = sshll.u32 [#allocation5], 4
      %s35 = int_to_ptr.vmem [resolvable:$true] %s34
      %40 = dma.hbm_to_vmem [thread:$0]  %s1, 256, %s35, [#allocation6], 128, 128, 8
    $region9: #{tpu_custom_call.1} parent=1 // pred_fallthru
      _
    // Predicated region
    $region10: #{tpu_custom_call.1} parent=1 // pred_check
      _
    $region11: #{tpu_custom_call.1} parent=1 // pred_check_branch
      %42 = sbr.rel (0) target = $region13
    $region12: #{tpu_custom_call.1} parent=1 // pred_region
      %s44 = ssub.s32 256, 256
      %45 = vsyncadd [#allocation6], %s44
      %s46 = sshll.u32 [#allocation7], 4
      %s47 = int_to_ptr.vmem [resolvable:$true] %s46
      %52 = dma.hbm_to_vmem [thread:$0]  %s2, 256, %s47, [#allocation6], 128, 128, 8
    $region13: #{tpu_custom_call.1} parent=1 // pred_fallthru
      _
    // Predicated region
    $region14: #{tpu_custom_call.1} parent=1 // pred_check
      _
    $region15: #{tpu_custom_call.1} parent=1 // pred_check_branch
      %54 = sbr.rel (0) target = $region17
    $region16: #{tpu_custom_call.1} parent=1 // pred_region
      %s56 = ssub.s32 256, 256
      %57 = vsyncadd [#allocation9], %s56
      %s58 = sshll.u32 [#allocation8], 4
      %s59 = int_to_ptr.vmem [resolvable:$true] %s58
      %64 = dma.hbm_to_vmem [thread:$0]  %s3, 256, %s59, [#allocation9], 128, 128, 8
    $region17: #{tpu_custom_call.1} parent=1 // pred_fallthru
      _
    // Predicated region
    $region18: #{tpu_custom_call.1} parent=1 // pred_check
      _
    $region19: #{tpu_custom_call.1} parent=1 // pred_check_branch
      %66 = sbr.rel (0) target = $region21
    $region20: #{tpu_custom_call.1} parent=1 // pred_region
      %s68 = ssub.s32 256, 256
      %69 = vsyncadd [#allocation9], %s68
      %s70 = sshll.u32 [#allocation10], 4
      %s71 = int_to_ptr.vmem [resolvable:$true] %s70
      %76 = dma.hbm_to_vmem [thread:$0]  %s4, 256, %s71, [#allocation9], 128, 128, 8
    $region21: #{tpu_custom_call.1} parent=1 // pred_fallthru
      _
    // Predicated region
    $region22: #{tpu_custom_call.1} parent=1 // pred_check
      _
    $region23: #{tpu_custom_call.1} parent=1 // pred_check_branch
      %78 = sbr.rel (0) target = $region25
    $region24: #{tpu_custom_call.1} parent=1 // pred_region
      _
    $region25: #{tpu_custom_call.1} parent=1 // pred_fallthru
      _
    // Predicated region
    $region26: #{tpu_custom_call.1} parent=1 // pred_check
      _
    $region27: #{tpu_custom_call.1} parent=1 // pred_check_branch
      %80 = sbr.rel (0) target = $region29
    $region28: #{tpu_custom_call.1} parent=1 // pred_region
      %s82 = ssub.s32 256, 256
      %83 = vsyncadd [#allocation12], %s82
      %s84 = sshll.u32 [#allocation11], 4
      %s85 = int_to_ptr.vmem [resolvable:$true] %s84
      %90 = dma.hbm_to_vmem [thread:$0]  %s6, 256, %s85, [#allocation12], 128, 128, 8
    $region29: #{tpu_custom_call.1} parent=1 // pred_fallthru
      _
    // Predicated region
    $region30: #{tpu_custom_call.1} parent=1 // pred_check
      _
    $region31: #{tpu_custom_call.1} parent=1 // pred_check_branch
      %92 = sbr.rel (0) target = $region33
    $region32: #{tpu_custom_call.1} parent=1 // pred_region
      %93 = dma.done [#allocation3], 256
    $region33: #{tpu_custom_call.1} parent=1 // pred_fallthru
      _
    // Predicated region
    $region34: #{tpu_custom_call.1} parent=1 // pred_check
      _
    $region35: #{tpu_custom_call.1} parent=1 // pred_check_branch
      %95 = sbr.rel (0) target = $region37
    $region36: #{tpu_custom_call.1} parent=1 // pred_region
      %96 = dma.done [#allocation6], 256
    $region37: #{tpu_custom_call.1} parent=1 // pred_fallthru
      _
    // Predicated region
    $region38: #{tpu_custom_call.1} parent=1 // pred_check
      _
    $region39: #{tpu_custom_call.1} parent=1 // pred_check_branch
      %98 = sbr.rel (0) target = $region41
    $region40: #{tpu_custom_call.1} parent=1 // pred_region
      %99 = dma.done [#allocation6], 256
    $region41: #{tpu_custom_call.1} parent=1 // pred_fallthru
      _
    // Predicated region
    $region42: #{tpu_custom_call.1} parent=1 // pred_check
      _
    $region43: #{tpu_custom_call.1} parent=1 // pred_check_branch
      %101 = sbr.rel (0) target = $region45
    $region44: #{tpu_custom_call.1} parent=1 // pred_region
      %102 = dma.done [#allocation9], 256
    $region45: #{tpu_custom_call.1} parent=1 // pred_fallthru
      _
    // Predicated region
    $region46: #{tpu_custom_call.1} parent=1 // pred_check
      _
    $region47: #{tpu_custom_call.1} parent=1 // pred_check_branch
      %104 = sbr.rel (0) target = $region49
    $region48: #{tpu_custom_call.1} parent=1 // pred_region
      %105 = dma.done [#allocation9], 256
    $region49: #{tpu_custom_call.1} parent=1 // pred_fallthru
      _
    // Predicated region
    $region50: #{tpu_custom_call.1} parent=1 // pred_check
      _
    $region51: #{tpu_custom_call.1} parent=1 // pred_check_branch
      %107 = sbr.rel (0) target = $region53
    $region52: #{tpu_custom_call.1} parent=1 // pred_region
      %108 = dma.done [#allocation12], 256
    $region53: #{tpu_custom_call.1} parent=1 // pred_fallthru
      _
    %p109 = scmp.eq.s32.totalorder 0, 0
    // Predicated region
    $region54: #{tpu_custom_call.1} parent=1 // pred_check
      %p110 = pneg %p109
    $region55: #{tpu_custom_call.1} parent=1 // pred_check_branch
      %112 = sbr.rel (%p110) target = $region57
    $region56: #{tpu_custom_call.1} parent=1 // pred_region
      %113 = vst [vmem:[#allocation13] sm:$0xff] 0.0
    $region57: #{tpu_custom_call.1} parent=1 // pred_fallthru
      _
    %v114 = vld [vmem:[%s5] sm:$0xff]
    %v115 = vld [vmem:[%s5 + $0x8] sm:$0xff]
    %v116 = vld [vmem:[#allocation11] sm:$0xff]
    %v117 = vld [vmem:[#allocation11 + $0x8] sm:$0xff]
    %v118 = vld [vmem:[#allocation2] sm:$0xff]
    %v119 = vld [vmem:[#allocation2 + $0x8] sm:$0xff]
    %v120 = vld [vmem:[#allocation5] sm:$0xff]
    %v121 = vld [vmem:[#allocation5 + $0x8] sm:$0xff]
    %v122 = vld [vmem:[#allocation7] sm:$0xff]
    %v123 = vld [vmem:[#allocation7 + $0x8] sm:$0xff]
    %v124 = vld [vmem:[#allocation8] sm:$0xff]
    %v125 = vld [vmem:[#allocation8 + $0x8] sm:$0xff]
    %v126 = vld [vmem:[#allocation10] sm:$0xff]
    %v127 = vld [vmem:[#allocation10 + $0x8] sm:$0xff]
    %v128 = vsub.f32 %v118, %v114
    %v129 = vsub.f32 %v119, %v115
    %v130 = vand.u32 2147483647, %v128
    %v131 = vand.u32 2147483647, %v129
    %v132 = vsub.f32 %v120, %v116
    %v133 = vsub.f32 %v121, %v117
    %v134 = vand.u32 2147483647, %v132
    %v135 = vand.u32 2147483647, %v133
    %v136 = vadd.f32 %v130, %v134
    %v137 = vadd.f32 %v131, %v135
    %v138 = vsub.f32 %v122, %v114
    %v139 = vsub.f32 %v123, %v115
    %v140 = vand.u32 2147483647, %v138
    %v141 = vand.u32 2147483647, %v139
    %v142 = vsub.f32 %v124, %v116
    %v143 = vsub.f32 %v125, %v117
    %v144 = vand.u32 2147483647, %v142
    %v145 = vand.u32 2147483647, %v143
    %v146 = vadd.f32 %v140, %v144
    %v147 = vadd.f32 %v141, %v145
    %v148 = vmul.f32 %v146, 0.5
    %v149 = vmul.f32 %v147, 0.5
    %v150 = vadd.f32 %v136, %v148
    %v151 = vadd.f32 %v137, %v149
    %v152 = vsub.f32 %v126, %v116
    %v153 = vsub.f32 %v127, %v117
    %v154 = vand.u32 2147483647, %v152
    %v155 = vand.u32 2147483647, %v153
    %v156 = vmul.f32 %v154, 0.1
    %v157 = vmul.f32 %v155, 0.1
    %v158 = vadd.f32 %v150, %v156
    %v159 = vadd.f32 %v151, %v157
    %v160 = vld [vmem:[#allocation13] sm:$0xff]
    %v161 = vadd.f32 %v158, %v159
    %v162 = vadd.f32 %v160, %v161
    %163 = vst [vmem:[#allocation13] sm:$0xff] %v162
    // Predicated region
    $region58: #{tpu_custom_call.1} parent=1 // pred_check
      _
    $region59: #{tpu_custom_call.1} parent=1 // pred_check_branch
      %165 = sbr.rel (0) target = $region61
    $region60: #{tpu_custom_call.1} parent=1 // pred_region
      %s167 = ssub.s32 128, 128
      %168 = vsyncadd [#allocation4], %s167
      %s170 = sshll.u32 [#allocation13], 4
      %s171 = int_to_ptr.vmem [resolvable:$true] %s170
      %173 = dma.vmem_to_hbm [thread:$0]  %s171, 128, %s7, [#allocation4]
    $region61: #{tpu_custom_call.1} parent=1 // pred_fallthru
      _
    // Predicated region
    $region62: #{tpu_custom_call.1} parent=1 // pred_check
      _
    $region63: #{tpu_custom_call.1} parent=1 // pred_check_branch
      %175 = sbr.rel (0) target = $region65
    $region64: #{tpu_custom_call.1} parent=1 // pred_region
      %176 = dma.done [#allocation4], 128
    $region65: #{tpu_custom_call.1} parent=1 // pred_fallthru
      _
    %177 = vsyncpa [#allocation3], 1
    %178 = vsyncpa [#allocation6], 1
    %179 = vsyncpa [#allocation9], 1
    %180 = vsyncpa [#allocation12], 1
    %181 = vsyncpa [#allocation4], 1

</llo_original>
